<compile_context>
chip_gen: v7x
topology: tpu7x:2x2x1
jax: 0.10.0
libtpu: 0.0.40
codegen_flags: <defaults>
</compile_context>

<pallas_src>
import jax
import jax.numpy as jnp
from jax.experimental import pallas as pl
from jax.experimental.pallas import tpu as pltpu

LANE = 128          # lane (last-dim) tile width
SUBLANE = 8         # sublane (second-to-last dim) tile width
MAX_B_TILE = 1024   # per-grid-step batch tile (fits every TPU gen, see header)
OUT_STRIDE = 32     # lane offset between the three packed shares in the output


def _round_up(n, m):
    return ((n + m - 1) // m) * m


def _cdiv(a, b):
    return -(-a // b)


def _pad_to(a, shape):
    return jnp.pad(a, [(0, s - d) for d, s in zip(a.shape, shape)])


def netrnn_kernel(x_ref, w1x_ref, b1_ref, wf1_ref, wf2_ref, w3_ref,
                  bout_ref, o_ref):
    hid_p = wf1_ref.shape[0]

    # Loop-invariant term x @ W1x + b1: computed once, reused in all 3 steps.
    xw = (jnp.dot(x_ref[...], w1x_ref[...],
                  preferred_element_type=jnp.float32) + b1_ref[...])

    # --- iteration 0: latent = 0, so h0 = relu(xw) ---
    h = jnp.maximum(xw, 0.0).astype(jnp.bfloat16)

    # --- fused: share0 = h0 @ W2 (lanes hid_p..), recur = h0 @ W1h ---
    t = jnp.dot(h, wf1_ref[...], preferred_element_type=jnp.float32)
    out = t[:, hid_p:]
    h = jnp.maximum(xw + t[:, :hid_p], 0.0).astype(jnp.bfloat16)   # h1

    # --- fused: share1 = h1 @ W3 (lanes hid_p..), recur = h1 @ W1h ---
    t = jnp.dot(h, wf2_ref[...], preferred_element_type=jnp.float32)
    out = out + t[:, hid_p:]
    h = jnp.maximum(xw + t[:, :hid_p], 0.0).astype(jnp.bfloat16)   # h2

    # --- iteration 2 share: share2 = h2 @ W3 (placed at lanes 64..) ---
    out = out + jnp.dot(h, w3_ref[...], preferred_element_type=jnp.float32)

    # All three shares live in disjoint lane ranges; one combined bias, one
    # unmasked full-lane store.
    o_ref[...] = out + bout_ref[...]


def prepare_params(params, output_size):
    """Fuse, zero-pad and bf16-cast params for the kernel."""
    w1x, w1h, b1, w2, b2, w3, b3 = params
    input_size, hidden_size = w1x.shape
    assert output_size + 1 <= OUT_STRIDE, "packed-output layout needs os+1 <= 32"

    in_p = _round_up(input_size, LANE)
    hid_p = _round_up(hidden_size, LANE)

    w1x_p = _pad_to(w1x, (in_p, hid_p)).astype(jnp.bfloat16)
    b1_p = _pad_to(b1, (1, hid_p)).astype(jnp.float32)
    w1h_p = _pad_to(w1h, (hid_p, hid_p))

    def place(w, lane_off):
        # Put w's columns at [lane_off : lane_off + ncols] of a 128-lane block.
        blk = jnp.zeros((hid_p, LANE), jnp.float32)
        return blk.at[:hidden_size, lane_off:lane_off + w.shape[1]].set(w)

    wf1 = jnp.concatenate([w1h_p, place(w2, 0)], axis=1).astype(jnp.bfloat16)
    wf2 = jnp.concatenate([w1h_p, place(w3, OUT_STRIDE)],
                          axis=1).astype(jnp.bfloat16)
    w3_last = place(w3, 2 * OUT_STRIDE).astype(jnp.bfloat16)

    bout = jnp.zeros((1, LANE), jnp.float32)
    bout = bout.at[:, 0:output_size].set(b2)
    bout = bout.at[:, OUT_STRIDE:OUT_STRIDE + output_size + 1].set(b3)
    bout = bout.at[:, 2 * OUT_STRIDE:2 * OUT_STRIDE + output_size + 1].set(b3)

    return (w1x_p, b1_p, wf1, wf2, w3_last, bout)


def _choose_batch_tiling(B):
    # >= 2 grid steps whenever the batch allows it (lets the "parallel" axis
    # shard across v7x's two TensorCores); split B evenly to avoid
    # over-padding; round each tile up to the sublane (8).
    n_tiles = max(_cdiv(B, MAX_B_TILE), 2 if B >= 2 * SUBLANE else 1)
    bt = _round_up(_cdiv(B, n_tiles), SUBLANE)
    return bt, bt * n_tiles, n_tiles


def netrnn_forward(x, prepared, output_size):
    """x: [B, input_size] float32; returns (share0, share1, share2)."""
    w1x, b1, wf1, wf2, w3l, bout = prepared
    B = x.shape[0]
    in_p, hid_p = w1x.shape

    bt, B_p, n_tiles = _choose_batch_tiling(B)
    x_p = _pad_to(x.astype(jnp.bfloat16), (B_p, in_p))

    flops = 2 * B_p * (in_p * hid_p
                       + 2 * hid_p * (hid_p + LANE)
                       + hid_p * LANE)
    bytes_accessed = (2 * (x_p.size + w1x.size + wf1.size + wf2.size + w3l.size)
                      + 4 * (b1.size + bout.size + B_p * LANE))

    def resident(a):
        # Constant block index -> array stays VMEM-resident across grid steps.
        return pl.BlockSpec(a.shape, lambda i: (0, 0))

    out = pl.pallas_call(
        netrnn_kernel,
        grid=(n_tiles,),
        out_shape=jax.ShapeDtypeStruct((B_p, LANE), jnp.float32),
        in_specs=[
            pl.BlockSpec((bt, in_p), lambda i: (i, 0)),
            resident(w1x), resident(b1), resident(wf1),
            resident(wf2), resident(w3l), resident(bout),
        ],
        out_specs=pl.BlockSpec((bt, LANE), lambda i: (i, 0)),
        compiler_params=pltpu.CompilerParams(
            dimension_semantics=("parallel",),
            vmem_limit_bytes=48 * 1024 * 1024),
        cost_estimate=pl.CostEstimate(
            flops=flops, transcendentals=0, bytes_accessed=bytes_accessed),
    )(x_p, w1x, b1, wf1, wf2, w3l, bout)

    share0 = out[:B, 0:output_size]
    share1 = out[:B, OUT_STRIDE:OUT_STRIDE + output_size + 1]
    share2 = out[:B, 2 * OUT_STRIDE:2 * OUT_STRIDE + output_size + 1]
    return share0, share1, share2


def init_params(key, input_size, hidden_size, output_size):
    """Deterministic PyTorch-Linear-style init (uniform +-1/sqrt(fan_in))."""
    ks = jax.random.split(key, 6)
    fan1 = input_size + hidden_size
    bound1 = 1.0 / jnp.sqrt(fan1)
    w1 = jax.random.uniform(ks[0], (fan1, hidden_size),
                            minval=-bound1, maxval=bound1, dtype=jnp.float32)
    b1 = jax.random.uniform(ks[1], (1, hidden_size),
                            minval=-bound1, maxval=bound1, dtype=jnp.float32)
    w1x = w1[:input_size, :]
    w1h = w1[input_size:, :]

    bound2 = 1.0 / jnp.sqrt(hidden_size)
    w2 = jax.random.uniform(ks[2], (hidden_size, output_size),
                            minval=-bound2, maxval=bound2, dtype=jnp.float32)
    b2 = jax.random.uniform(ks[3], (1, output_size),
                            minval=-bound2, maxval=bound2, dtype=jnp.float32)
    w3 = jax.random.uniform(ks[4], (hidden_size, output_size + 1),
                            minval=-bound2, maxval=bound2, dtype=jnp.float32)
    b3 = jax.random.uniform(ks[5], (1, output_size + 1),
                            minval=-bound2, maxval=bound2, dtype=jnp.float32)
    return (w1x, w1h, b1, w2, b2, w3, b3)


def reference_forward(x, params):
    """Pure-JAX f32 reference matching the PyTorch forward exactly."""
    w1x, w1h, b1, w2, b2, w3, b3 = params
    B = x.shape[0]
    hidden = w1h.shape[0]
    latent = jnp.zeros((B, hidden), jnp.float32)
    share = []
    for i in range(3):
        latent = jax.nn.relu(x @ w1x + latent @ w1h + b1)
        if i == 0:
            share.append(latent @ w2 + b2)
        else:
            share.append(latent @ w3 + b3)
    return tuple(share)


if __name__ == "__main__":
    # Small shapes consistent with the module (original: 531 / 267 / 3).
    batch_size = 16      # >= 16 -> exercises the 2-step parallel batch grid
    input_size = 64
    hidden_size = 32
    output_size = 3

    key = jax.random.PRNGKey(0)
    k_x, k_p = jax.random.split(key)
    x = jax.random.normal(k_x, (batch_size, input_size), dtype=jnp.float32)
    params = init_params(k_p, input_size, hidden_size, output_size)
    prepared = prepare_params(params, output_size)

    outs = netrnn_forward(x, prepared, output_size)
    outs = jax.block_until_ready(outs)

    refs = reference_forward(x, params)
    for o, r in zip(outs, refs):
        assert o.shape == r.shape, (o.shape, r.shape)
        # bf16 MXU inputs with f32 accumulation: loose tolerance vs f32 ref.
        assert jnp.allclose(o, r, atol=5e-2, rtol=5e-2), \
            float(jnp.max(jnp.abs(o - r)))

    print("KERNEL_OK")
</pallas_src>

<mosaic_0001>
module attributes {stable_mosaic.version = 11 : i64} {
  func.func @netrnn_kernel(%arg0: i32, %arg1: memref<8x128xbf16, #tpu.memory_space<vmem>>, %arg2: memref<128x128xbf16, #tpu.memory_space<vmem>>, %arg3: memref<1x128xf32, #tpu.memory_space<vmem>>, %arg4: memref<128x256xbf16, #tpu.memory_space<vmem>>, %arg5: memref<128x256xbf16, #tpu.memory_space<vmem>>, %arg6: memref<128x128xbf16, #tpu.memory_space<vmem>>, %arg7: memref<1x128xf32, #tpu.memory_space<vmem>>, %arg8: memref<8x128xf32, #tpu.memory_space<vmem>>) attributes {dimension_semantics = [#tpu.dimension_semantics<parallel>], iteration_bounds = array<i64: 2>, scalar_prefetch = 0 : i64, scratch_operands = 0 : i64, tpu.core_type = #tpu.core_type<tc>, window_params = [{transform_indices = @transform_0, window_bounds = array<i64: 8, 128>}, {pipeline_mode = #tpu.pipeline_mode<synchronous>, transform_indices = @transform_1, window_bounds = array<i64: 128, 128>}, {pipeline_mode = #tpu.pipeline_mode<synchronous>, transform_indices = @transform_2, window_bounds = array<i64: 1, 128>}, {pipeline_mode = #tpu.pipeline_mode<synchronous>, transform_indices = @transform_3, window_bounds = array<i64: 128, 256>}, {pipeline_mode = #tpu.pipeline_mode<synchronous>, transform_indices = @transform_4, window_bounds = array<i64: 128, 256>}, {pipeline_mode = #tpu.pipeline_mode<synchronous>, transform_indices = @transform_5, window_bounds = array<i64: 128, 128>}, {pipeline_mode = #tpu.pipeline_mode<synchronous>, transform_indices = @transform_6, window_bounds = array<i64: 1, 128>}, {transform_indices = @transform_7, window_bounds = array<i64: 8, 128>}]} {
    %c0 = arith.constant 0 : index
    %c0_0 = arith.constant 0 : index
    %0 = vector.load %arg1[%c0, %c0_0] : memref<8x128xbf16, #tpu.memory_space<vmem>>, vector<8x128xbf16>
    %c0_1 = arith.constant 0 : index
    %c0_2 = arith.constant 0 : index
    %1 = vector.load %arg2[%c0_1, %c0_2] : memref<128x128xbf16, #tpu.memory_space<vmem>>, vector<128x128xbf16>
    %cst = arith.constant dense<0.000000e+00> : vector<8x128xf32>
    %2 = tpu.matmul %0, %1, %cst {dimension_numbers = #tpu.dot_dimension_numbers<[1], [0], [0], [1], [0, 0, 1, 1], [], []>} : vector<8x128xbf16>, vector<128x128xbf16>, vector<8x128xf32> -> vector<8x128xf32>
    %c0_3 = arith.constant 0 : index
    %c0_4 = arith.constant 0 : index
    %3 = vector.load %arg3[%c0_3, %c0_4] : memref<1x128xf32, #tpu.memory_space<vmem>>, vector<1x128xf32>
    %4 = vector.broadcast %3 : vector<1x128xf32> to vector<8x128xf32>
    %5 = arith.addf %2, %4 : vector<8x128xf32>
    %cst_5 = arith.constant 0.000000e+00 : f32
    %6 = vector.broadcast %cst_5 : f32 to vector<8x128xf32>
    %7 = arith.maximumf %5, %6 : vector<8x128xf32>
    %8 = arith.truncf %7 : vector<8x128xf32> to vector<8x128xbf16>
    %c0_6 = arith.constant 0 : index
    %c0_7 = arith.constant 0 : index
    %9 = vector.load %arg4[%c0_6, %c0_7] : memref<128x256xbf16, #tpu.memory_space<vmem>>, vector<128x256xbf16>
    %cst_8 = arith.constant dense<0.000000e+00> : vector<8x256xf32>
    %10 = tpu.matmul %8, %9, %cst_8 {dimension_numbers = #tpu.dot_dimension_numbers<[1], [0], [0], [1], [0, 0, 1, 1], [], []>} : vector<8x128xbf16>, vector<128x256xbf16>, vector<8x256xf32> -> vector<8x256xf32>
    %11 = vector.extract_strided_slice %10 {offsets = [0, 128], sizes = [8, 128], strides = [1, 1]} : vector<8x256xf32> to vector<8x128xf32>
    %12 = vector.extract_strided_slice %10 {offsets = [0, 0], sizes = [8, 128], strides = [1, 1]} : vector<8x256xf32> to vector<8x128xf32>
    %13 = arith.addf %5, %12 : vector<8x128xf32>
    %cst_9 = arith.constant 0.000000e+00 : f32
    %14 = vector.broadcast %cst_9 : f32 to vector<8x128xf32>
    %15 = arith.maximumf %13, %14 : vector<8x128xf32>
    %16 = arith.truncf %15 : vector<8x128xf32> to vector<8x128xbf16>
    %c0_10 = arith.constant 0 : index
    %c0_11 = arith.constant 0 : index
    %17 = vector.load %arg5[%c0_10, %c0_11] : memref<128x256xbf16, #tpu.memory_space<vmem>>, vector<128x256xbf16>
    %cst_12 = arith.constant dense<0.000000e+00> : vector<8x256xf32>
    %18 = tpu.matmul %16, %17, %cst_12 {dimension_numbers = #tpu.dot_dimension_numbers<[1], [0], [0], [1], [0, 0, 1, 1], [], []>} : vector<8x128xbf16>, vector<128x256xbf16>, vector<8x256xf32> -> vector<8x256xf32>
    %19 = vector.extract_strided_slice %18 {offsets = [0, 128], sizes = [8, 128], strides = [1, 1]} : vector<8x256xf32> to vector<8x128xf32>
    %20 = arith.addf %11, %19 : vector<8x128xf32>
    %21 = vector.extract_strided_slice %18 {offsets = [0, 0], sizes = [8, 128], strides = [1, 1]} : vector<8x256xf32> to vector<8x128xf32>
    %22 = arith.addf %5, %21 : vector<8x128xf32>
    %cst_13 = arith.constant 0.000000e+00 : f32
    %23 = vector.broadcast %cst_13 : f32 to vector<8x128xf32>
    %24 = arith.maximumf %22, %23 : vector<8x128xf32>
    %25 = arith.truncf %24 : vector<8x128xf32> to vector<8x128xbf16>
    %c0_14 = arith.constant 0 : index
    %c0_15 = arith.constant 0 : index
    %26 = vector.load %arg6[%c0_14, %c0_15] : memref<128x128xbf16, #tpu.memory_space<vmem>>, vector<128x128xbf16>
    %cst_16 = arith.constant dense<0.000000e+00> : vector<8x128xf32>
    %27 = tpu.matmul %25, %26, %cst_16 {dimension_numbers = #tpu.dot_dimension_numbers<[1], [0], [0], [1], [0, 0, 1, 1], [], []>} : vector<8x128xbf16>, vector<128x128xbf16>, vector<8x128xf32> -> vector<8x128xf32>
    %28 = arith.addf %20, %27 : vector<8x128xf32>
    %c0_17 = arith.constant 0 : index
    %c0_18 = arith.constant 0 : index
    %29 = vector.load %arg7[%c0_17, %c0_18] : memref<1x128xf32, #tpu.memory_space<vmem>>, vector<1x128xf32>
    %30 = vector.broadcast %29 : vector<1x128xf32> to vector<8x128xf32>
    %31 = arith.addf %28, %30 : vector<8x128xf32>
    %c0_19 = arith.constant 0 : index
    %c0_20 = arith.constant 0 : index
    %32 = vector.load %arg8[%c0_19, %c0_20] : memref<8x128xf32, #tpu.memory_space<vmem>>, vector<8x128xf32>
    tpu.vector_store %arg8[%c0_19, %c0_20], %31 {strides = array<i32>} : memref<8x128xf32, #tpu.memory_space<vmem>>, vector<8x128xf32>,
    return
  }
  func.func @transform_0(%arg0: i32) -> (i32, i32) {
    %c0_i32 = arith.constant 0 : i32
    %c0_i32_0 = arith.constant 0 : i32
    return %arg0, %c0_i32 : i32, i32
  }
  func.func @transform_1(%arg0: i32) -> (i32, i32) {
    %c0_i32 = arith.constant 0 : i32
    %c0_i32_0 = arith.constant 0 : i32
    %c0_i32_1 = arith.constant 0 : i32
    return %c0_i32, %c0_i32_0 : i32, i32
  }
  func.func @transform_2(%arg0: i32) -> (i32, i32) {
    %c0_i32 = arith.constant 0 : i32
    %c0_i32_0 = arith.constant 0 : i32
    %c0_i32_1 = arith.constant 0 : i32
    return %c0_i32, %c0_i32_0 : i32, i32
  }
  func.func @transform_3(%arg0: i32) -> (i32, i32) {
    %c0_i32 = arith.constant 0 : i32
    %c0_i32_0 = arith.constant 0 : i32
    %c0_i32_1 = arith.constant 0 : i32
    return %c0_i32, %c0_i32_0 : i32, i32
  }
  func.func @transform_4(%arg0: i32) -> (i32, i32) {
    %c0_i32 = arith.constant 0 : i32
    %c0_i32_0 = arith.constant 0 : i32
    %c0_i32_1 = arith.constant 0 : i32
    return %c0_i32, %c0_i32_0 : i32, i32
  }
  func.func @transform_5(%arg0: i32) -> (i32, i32) {
    %c0_i32 = arith.constant 0 : i32
    %c0_i32_0 = arith.constant 0 : i32
    %c0_i32_1 = arith.constant 0 : i32
    return %c0_i32, %c0_i32_0 : i32, i32
  }
  func.func @transform_6(%arg0: i32) -> (i32, i32) {
    %c0_i32 = arith.constant 0 : i32
    %c0_i32_0 = arith.constant 0 : i32
    %c0_i32_1 = arith.constant 0 : i32
    return %c0_i32, %c0_i32_0 : i32, i32
  }
  func.func @transform_7(%arg0: i32) -> (i32, i32) {
    %c0_i32 = arith.constant 0 : i32
    %c0_i32_0 = arith.constant 0 : i32
    return %arg0, %c0_i32 : i32, i32
  }
}

</mosaic_0001>

<llo_original>
// kernel: tpu_custom_call.1
$region0: #{tpu_custom_call.1}
  #allocation0 [shape = 'u32[]', space=smem, size = 0x4, offset = 0x4, fixed_abs, tag = 'smem constant byte address 0x4 - core index']
  #allocation1 [shape = 'u32[144,128]{1,0:T(1,128)}', space=vmem, size = 0x12000, scoped, tag = 'internal scratch']
  %s0 = inlined_call_operand.hbm [shape: bf16[16,128], index: 0, kind: input, shape index: {}]
  %s1 = inlined_call_operand.hbm [shape: bf16[128,128], index: 1, kind: input, shape index: {}]
  %s2 = inlined_call_operand.vmem [shape: f32[1,128], index: 2, kind: input, shape index: {}]
  %s3 = inlined_call_operand.hbm [shape: bf16[128,256], index: 3, kind: input, shape index: {}]
  %s4 = inlined_call_operand.hbm [shape: bf16[128,256], index: 4, kind: input, shape index: {}]
  %s5 = inlined_call_operand.hbm [shape: bf16[128,128], index: 5, kind: input, shape index: {}]
  %s6 = inlined_call_operand.vmem [shape: f32[1,128], index: 6, kind: input, shape index: {}]
  %s7 = inlined_call_operand.hbm [shape: f32[16,128], index: 7, kind: output, shape index: {}]
  %s8 = sld [smem:[#allocation0]]
  $region81: #{tpu_custom_call.1} parent=0
    _
  %s10 = ssub.s32 1, %s8
  %s11 = scalar_select 0, %s10, %s8
  $region1: #{tpu_custom_call.1} parent=0
    #allocation2 [shape = 'u8[4096]{0}', space=vmem, size = 0x1000, scoped, tag = 'input window, operand 0']
    #allocation3 [shape = 's32[2]{0}', space=sflag, size = 0x8, scoped, tag = 'scoped memory for tpu_custom_call.1']
    #allocation4 [shape = 's32[2]{0}', space=sflag, size = 0x8, scoped, tag = 'scoped memory for tpu_custom_call.1']
    #allocation5 [shape = 'u8[32768]{0}', space=vmem, size = 0x8000, scoped, tag = 'input window, operand 1, single buffered']
    #allocation6 [shape = 's32[1]{0}', space=sflag, size = 0x4, scoped, tag = 'scoped memory for tpu_custom_call.1']
    #allocation7 [shape = 'u8[65536]{0}', space=vmem, size = 0x10000, scoped, tag = 'input window, operand 3, single buffered']
    #allocation8 [shape = 'u8[65536]{0}', space=vmem, size = 0x10000, scoped, tag = 'input window, operand 4, single buffered']
    #allocation9 [shape = 's32[1]{0}', space=sflag, size = 0x4, scoped, tag = 'scoped memory for tpu_custom_call.1']
    #allocation10 [shape = 'u8[32768]{0}', space=vmem, size = 0x8000, scoped, tag = 'input window, operand 5, single buffered']
    #allocation11 [shape = 'u8[8192]{0}', space=vmem, size = 0x2000, scoped, tag = 'output window, operand 0']
    %12 = vsyncpa [#allocation3], 0
    %s13 = scalar_lea.sflag [#allocation3], 1
    %14 = vsyncpa %s13, 0
    %15 = vsyncpa [#allocation6], 0
    %16 = vsyncpa [#allocation9], 0
    %17 = vsyncpa [#allocation4], 0
    %s18 = scalar_lea.sflag [#allocation4], 1
    %19 = vsyncpa %s18, 0
    loop: start=0, step=1, limit=4
    $region2: #{tpu_custom_call.1} parent=1 // loop_pre_header
      _
    $region3: #{tpu_custom_call.1} parent=1 // loop_header
      %s21 = sphi 0, %s25
      %p22 = scmp.ge.s32.totalorder %s21, 4
      %s31 = sphi 0, %s33
      %s34 = sphi 0, %s31
      %s35 = sphi 0, %s34
      %s51 = sphi 0, %s35
      %s55 = sphi 0, %s55
      %s57 = sphi 0, %s55
      %s58 = sphi 0, %s57
      %s72 = sphi 0, %s58
      %s76 = sphi 0, %s76
      %s78 = sphi 0, %s76
      %s79 = sphi 0, %s78
      %s93 = sphi 0, %s79
      %s97 = sphi 0, %s97
      %s99 = sphi 0, %s97
      %s100 = sphi 0, %s99
      %s114 = sphi 0, %s100
      %s118 = sphi 0, %s118
      %s120 = sphi 0, %s118
      %s121 = sphi 0, %s120
      %s135 = sphi 0, %s121
      %s139 = sphi 0, %s139
      %s141 = sphi 0, %s139
      %s142 = sphi 0, %s141
      %s156 = sphi 0, %s142
      %s160 = sphi 0, %s160
      %s162 = sphi 0, %s160
      %s163 = sphi 0, %s162
      %s177 = sphi 0, %s163
      %s183 = sphi 0, %s185
      %s186 = sphi 0, %s183
      %s187 = sphi 0, %s186
      %s203 = sphi 0, %s187
    $region4: #{tpu_custom_call.1} parent=1 // loop_header_branch
      %24 = sbr.rel (%p22) target = $region8
    $region5: #{tpu_custom_call.1} parent=1 // loop_body
      %s26 = ssub.s32 %s21, 1
      %s27 = ssub.s32 %s21, 2
      %s28 = sadd.s32 %s21, 1
      %s29 = ssub.s32 %s21, %s28
      %p30 = scmp.eq.s32.totalorder %s29, 0
      %s32 = sadd.s32 %s31, 1
      %s33 = scalar_select %p30, %s31, %s32
      %p36 = pneg %p30
      %p37 = scmp.eq.s32.totalorder %s21, 1
      %p38 = por %p36, %p37
      %p39 = scmp.ne.s32.totalorder %s31, %s34
      %p40 = scmp.eq.s32.totalorder %s21, 0
      %p41 = por %p39, %p40
      %p42 = scmp.ne.s32.totalorder %s31, %s34
      %p43 = scmp.eq.s32.totalorder %s26, 1
      %p44 = por %p42, %p43
      %p45 = scmp.ne.s32.totalorder %s34, %s35
      %p46 = scmp.eq.s32.totalorder %s26, 0
      %p47 = por %p45, %p46
      %p48 = scmp.ne.s32.totalorder %s34, %s35
      %p49 = scmp.eq.s32.totalorder %s27, 1
      %p50 = por %p48, %p49
      %p52 = scmp.ne.s32.totalorder %s35, %s51
      %p53 = scmp.eq.s32.totalorder %s27, 0
      %p54 = por %p52, %p53
      %s56 = sadd.s32 %s55, 1
      %p59 = scmp.eq.s32.totalorder %s21, 1
      %p60 = scmp.ne.s32.totalorder %s55, %s57
      %p61 = scmp.eq.s32.totalorder %s21, 0
      %p62 = por %p60, %p61
      %p63 = scmp.ne.s32.totalorder %s55, %s57
      %p64 = scmp.eq.s32.totalorder %s26, 1
      %p65 = por %p63, %p64
      %p66 = scmp.ne.s32.totalorder %s57, %s58
      %p67 = scmp.eq.s32.totalorder %s26, 0
      %p68 = por %p66, %p67
      %p69 = scmp.ne.s32.totalorder %s57, %s58
      %p70 = scmp.eq.s32.totalorder %s27, 1
      %p71 = por %p69, %p70
      %p73 = scmp.ne.s32.totalorder %s58, %s72
      %p74 = scmp.eq.s32.totalorder %s27, 0
      %p75 = por %p73, %p74
      %s77 = sadd.s32 %s76, 1
      %p80 = scmp.eq.s32.totalorder %s21, 1
      %p81 = scmp.ne.s32.totalorder %s76, %s78
      %p82 = scmp.eq.s32.totalorder %s21, 0
      %p83 = por %p81, %p82
      %p84 = scmp.ne.s32.totalorder %s76, %s78
      %p85 = scmp.eq.s32.totalorder %s26, 1
      %p86 = por %p84, %p85
      %p87 = scmp.ne.s32.totalorder %s78, %s79
      %p88 = scmp.eq.s32.totalorder %s26, 0
      %p89 = por %p87, %p88
      %p90 = scmp.ne.s32.totalorder %s78, %s79
      %p91 = scmp.eq.s32.totalorder %s27, 1
      %p92 = por %p90, %p91
      %p94 = scmp.ne.s32.totalorder %s79, %s93
      %p95 = scmp.eq.s32.totalorder %s27, 0
      %p96 = por %p94, %p95
      %s98 = sadd.s32 %s97, 1
      %p101 = scmp.eq.s32.totalorder %s21, 1
      %p102 = scmp.ne.s32.totalorder %s97, %s99
      %p103 = scmp.eq.s32.totalorder %s21, 0
      %p104 = por %p102, %p103
      %p105 = scmp.ne.s32.totalorder %s97, %s99
      %p106 = scmp.eq.s32.totalorder %s26, 1
      %p107 = por %p105, %p106
      %p108 = scmp.ne.s32.totalorder %s99, %s100
      %p109 = scmp.eq.s32.totalorder %s26, 0
      %p110 = por %p108, %p109
      %p111 = scmp.ne.s32.totalorder %s99, %s100
      %p112 = scmp.eq.s32.totalorder %s27, 1
      %p113 = por %p111, %p112
      %p115 = scmp.ne.s32.totalorder %s100, %s114
      %p116 = scmp.eq.s32.totalorder %s27, 0
      %p117 = por %p115, %p116
      %s119 = sadd.s32 %s118, 1
      %p122 = scmp.eq.s32.totalorder %s21, 1
      %p123 = scmp.ne.s32.totalorder %s118, %s120
      %p124 = scmp.eq.s32.totalorder %s21, 0
      %p125 = por %p123, %p124
      %p126 = scmp.ne.s32.totalorder %s118, %s120
      %p127 = scmp.eq.s32.totalorder %s26, 1
      %p128 = por %p126, %p127
      %p129 = scmp.ne.s32.totalorder %s120, %s121
      %p130 = scmp.eq.s32.totalorder %s26, 0
      %p131 = por %p129, %p130
      %p132 = scmp.ne.s32.totalorder %s120, %s121
      %p133 = scmp.eq.s32.totalorder %s27, 1
      %p134 = por %p132, %p133
      %p136 = scmp.ne.s32.totalorder %s121, %s135
      %p137 = scmp.eq.s32.totalorder %s27, 0
      %p138 = por %p136, %p137
      %s140 = sadd.s32 %s139, 1
      %p143 = scmp.eq.s32.totalorder %s21, 1
      %p144 = scmp.ne.s32.totalorder %s139, %s141
      %p145 = scmp.eq.s32.totalorder %s21, 0
      %p146 = por %p144, %p145
      %p147 = scmp.ne.s32.totalorder %s139, %s141
      %p148 = scmp.eq.s32.totalorder %s26, 1
      %p149 = por %p147, %p148
      %p150 = scmp.ne.s32.totalorder %s141, %s142
      %p151 = scmp.eq.s32.totalorder %s26, 0
      %p152 = por %p150, %p151
      %p153 = scmp.ne.s32.totalorder %s141, %s142
      %p154 = scmp.eq.s32.totalorder %s27, 1
      %p155 = por %p153, %p154
      %p157 = scmp.ne.s32.totalorder %s142, %s156
      %p158 = scmp.eq.s32.totalorder %s27, 0
      %p159 = por %p157, %p158
      %s161 = sadd.s32 %s160, 1
      %p164 = scmp.eq.s32.totalorder %s21, 1
      %p165 = scmp.ne.s32.totalorder %s160, %s162
      %p166 = scmp.eq.s32.totalorder %s21, 0
      %p167 = por %p165, %p166
      %p168 = scmp.ne.s32.totalorder %s160, %s162
      %p169 = scmp.eq.s32.totalorder %s26, 1
      %p170 = por %p168, %p169
      %p171 = scmp.ne.s32.totalorder %s162, %s163
      %p172 = scmp.eq.s32.totalorder %s26, 0
      %p173 = por %p171, %p172
      %p174 = scmp.ne.s32.totalorder %s162, %s163
      %p175 = scmp.eq.s32.totalorder %s27, 1
      %p176 = por %p174, %p175
      %p178 = scmp.ne.s32.totalorder %s163, %s177
      %p179 = scmp.eq.s32.totalorder %s27, 0
      %p180 = por %p178, %p179
      %s181 = ssub.s32 %s21, %s28
      %p182 = scmp.eq.s32.totalorder %s181, 0
      %s184 = sadd.s32 %s183, 1
      %s185 = scalar_select %p182, %s183, %s184
      %p188 = pneg %p182
      %p189 = scmp.eq.s32.totalorder %s21, 1
      %p190 = por %p188, %p189
      %p191 = scmp.ne.s32.totalorder %s183, %s186
      %p192 = scmp.eq.s32.totalorder %s21, 0
      %p193 = por %p191, %p192
      %p194 = scmp.ne.s32.totalorder %s183, %s186
      %p195 = scmp.eq.s32.totalorder %s26, 1
      %p196 = por %p194, %p195
      %p197 = scmp.ne.s32.totalorder %s186, %s187
      %p198 = scmp.eq.s32.totalorder %s26, 0
      %p199 = por %p197, %p198
      %p200 = scmp.ne.s32.totalorder %s186, %s187
      %p201 = scmp.eq.s32.totalorder %s27, 1
      %p202 = por %p200, %p201
      %p204 = scmp.ne.s32.totalorder %s187, %s203
      %p205 = scmp.eq.s32.totalorder %s27, 0
      %p206 = por %p204, %p205
      %p207 = scmp.le.s32.totalorder 1, %s21
      %p208 = scmp.lt.s32.totalorder %s21, 3
      %p209 = pnand %p207, %p208
      %p210 = pneg %p209
      // Predicated region
      $region9: #{tpu_custom_call.1} parent=5 // pred_check
        _
      $region10: #{tpu_custom_call.1} parent=5 // pred_check_branch
        %212 = sbr.rel (%p209) target = $region12
      $region11: #{tpu_custom_call.1} parent=5 // pred_region
        %s213 = ssub.s32 %s21, 1
        // Predicated region
        $region13: #{tpu_custom_call.1} parent=11 // pred_check
          %p214 = pneg %p68
        $region14: #{tpu_custom_call.1} parent=11 // pred_check_branch
          %216 = sbr.rel (%p214) target = $region16
        $region15: #{tpu_custom_call.1} parent=11 // pred_region
          %s218 = ssub.s32 1024, 1024
          %219 = vsyncadd [#allocation6], %s218
          %s220 = sshll.u32 [#allocation5], 4
          %s221 = int_to_ptr.vmem [resolvable:$true] %s220
          %226 = dma.hbm_to_vmem [thread:$0]  %s1, 1024, %s221, [#allocation6], 64, 64, 4
        $region16: #{tpu_custom_call.1} parent=11 // pred_fallthru
          _
        // Predicated region
        $region17: #{tpu_custom_call.1} parent=11 // pred_check
          %p227 = pneg %p89
        $region18: #{tpu_custom_call.1} parent=11 // pred_check_branch
          %229 = sbr.rel (%p227) target = $region20
        $region19: #{tpu_custom_call.1} parent=11 // pred_region
          _
        $region20: #{tpu_custom_call.1} parent=11 // pred_fallthru
          _
        // Predicated region
        $region21: #{tpu_custom_call.1} parent=11 // pred_check
          %p230 = pneg %p110
        $region22: #{tpu_custom_call.1} parent=11 // pred_check_branch
          %232 = sbr.rel (%p230) target = $region24
        $region23: #{tpu_custom_call.1} parent=11 // pred_region
          %s234 = ssub.s32 2048, 2048
          %235 = vsyncadd [#allocation6], %s234
          %s236 = sshll.u32 [#allocation7], 4
          %s237 = int_to_ptr.vmem [resolvable:$true] %s236
          %242 = dma.hbm_to_vmem [thread:$0]  %s3, 2048, %s237, [#allocation6], 128, 128, 8
        $region24: #{tpu_custom_call.1} parent=11 // pred_fallthru
          _
        // Predicated region
        $region25: #{tpu_custom_call.1} parent=11 // pred_check
          %p243 = pneg %p131
        $region26: #{tpu_custom_call.1} parent=11 // pred_check_branch
          %245 = sbr.rel (%p243) target = $region28
        $region27: #{tpu_custom_call.1} parent=11 // pred_region
          %s247 = ssub.s32 2048, 2048
          %248 = vsyncadd [#allocation9], %s247
          %s249 = sshll.u32 [#allocation8], 4
          %s250 = int_to_ptr.vmem [resolvable:$true] %s249
          %255 = dma.hbm_to_vmem [thread:$0]  %s4, 2048, %s250, [#allocation9], 128, 128, 8
        $region28: #{tpu_custom_call.1} parent=11 // pred_fallthru
          _
        // Predicated region
        $region29: #{tpu_custom_call.1} parent=11 // pred_check
          %p256 = pneg %p152
        $region30: #{tpu_custom_call.1} parent=11 // pred_check_branch
          %258 = sbr.rel (%p256) target = $region32
        $region31: #{tpu_custom_call.1} parent=11 // pred_region
          %s260 = ssub.s32 1024, 1024
          %261 = vsyncadd [#allocation9], %s260
          %s262 = sshll.u32 [#allocation10], 4
          %s263 = int_to_ptr.vmem [resolvable:$true] %s262
          %268 = dma.hbm_to_vmem [thread:$0]  %s5, 1024, %s263, [#allocation9], 64, 64, 4
        $region32: #{tpu_custom_call.1} parent=11 // pred_fallthru
          _
        // Predicated region
        $region33: #{tpu_custom_call.1} parent=11 // pred_check
          %p269 = pneg %p173
        $region34: #{tpu_custom_call.1} parent=11 // pred_check_branch
          %271 = sbr.rel (%p269) target = $region36
        $region35: #{tpu_custom_call.1} parent=11 // pred_region
          _
        $region36: #{tpu_custom_call.1} parent=11 // pred_fallthru
          _
      $region12: #{tpu_custom_call.1} parent=5 // pred_fallthru
        _
      %p272 = scmp.lt.s32.totalorder %s21, 2
      // Predicated region
      $region37: #{tpu_custom_call.1} parent=5 // pred_check
        %p273 = pneg %p272
      $region38: #{tpu_custom_call.1} parent=5 // pred_check_branch
        %275 = sbr.rel (%p273) target = $region40
      $region39: #{tpu_custom_call.1} parent=5 // pred_region
        // Predicated region
        $region41: #{tpu_custom_call.1} parent=39 // pred_check
          %p276 = pneg %p41
        $region42: #{tpu_custom_call.1} parent=39 // pred_check_branch
          %278 = sbr.rel (%p276) target = $region44
        $region43: #{tpu_custom_call.1} parent=39 // pred_region
          %s279 = sand.u32 %s31, 1
          %s280 = scalar_lea.sflag [#allocation3], %s279
          %s281 = sand.u32 %s31, 1
          %s282 = smul.addr %s281, 4
          %s283 = scalar_lea.vmem [#allocation2], %s282
          %s285 = ssub.s32 64, 64
          %286 = vsyncadd %s280, %s285
          %s287 = smul.addr %s21, 64
          %s288 = scalar_lea.hbm %s0, %s287
          %s290 = sshll.u32 %s283, 4
          %s291 = int_to_ptr.vmem [resolvable:$true] %s290
          %293 = dma.hbm_to_vmem [thread:$0]  %s288, 64, %s291, %s280
        $region44: #{tpu_custom_call.1} parent=39 // pred_fallthru
          _
      $region40: #{tpu_custom_call.1} parent=5 // pred_fallthru
        _
      %p294 = scmp.le.s32.totalorder 1, %s21
      %p295 = scmp.lt.s32.totalorder %s21, 3
      %p296 = pnand %p294, %p295
      %p297 = pneg %p296
      // Predicated region
      $region45: #{tpu_custom_call.1} parent=5 // pred_check
        _
      $region46: #{tpu_custom_call.1} parent=5 // pred_check_branch
        %299 = sbr.rel (%p296) target = $region48
      $region47: #{tpu_custom_call.1} parent=5 // pred_region
        %s300 = ssub.s32 %s21, 1
        %s301 = sand.u32 %s34, 1
        %s302 = scalar_lea.sflag [#allocation3], %s301
        %s303 = sand.u32 %s34, 1
        %s304 = smul.addr %s303, 4
        %s305 = scalar_lea.vmem [#allocation2], %s304
        // Predicated region
        $region49: #{tpu_custom_call.1} parent=47 // pred_check
          %p306 = pneg %p47
        $region50: #{tpu_custom_call.1} parent=47 // pred_check_branch
          %308 = sbr.rel (%p306) target = $region52
        $region51: #{tpu_custom_call.1} parent=47 // pred_region
          %309 = dma.done %s302, 64
        $region52: #{tpu_custom_call.1} parent=47 // pred_fallthru
          _
        // Predicated region
        $region53: #{tpu_custom_call.1} parent=47 // pred_check
          %p310 = pneg %p68
        $region54: #{tpu_custom_call.1} parent=47 // pred_check_branch
          %312 = sbr.rel (%p310) target = $region56
        $region55: #{tpu_custom_call.1} parent=47 // pred_region
          %313 = dma.done [#allocation6], 1024
        $region56: #{tpu_custom_call.1} parent=47 // pred_fallthru
          _
        // Predicated region
        $region57: #{tpu_custom_call.1} parent=47 // pred_check
          %p314 = pneg %p110
        $region58: #{tpu_custom_call.1} parent=47 // pred_check_branch
          %316 = sbr.rel (%p314) target = $region60
        $region59: #{tpu_custom_call.1} parent=47 // pred_region
          %317 = dma.done [#allocation6], 2048
        $region60: #{tpu_custom_call.1} parent=47 // pred_fallthru
          _
        // Predicated region
        $region61: #{tpu_custom_call.1} parent=47 // pred_check
          %p318 = pneg %p131
        $region62: #{tpu_custom_call.1} parent=47 // pred_check_branch
          %320 = sbr.rel (%p318) target = $region64
        $region63: #{tpu_custom_call.1} parent=47 // pred_region
          %321 = dma.done [#allocation9], 2048
        $region64: #{tpu_custom_call.1} parent=47 // pred_fallthru
          _
        // Predicated region
        $region65: #{tpu_custom_call.1} parent=47 // pred_check
          %p322 = pneg %p152
        $region66: #{tpu_custom_call.1} parent=47 // pred_check_branch
          %324 = sbr.rel (%p322) target = $region68
        $region67: #{tpu_custom_call.1} parent=47 // pred_region
          %325 = dma.done [#allocation9], 1024
        $region68: #{tpu_custom_call.1} parent=47 // pred_fallthru
          _
        %s326 = sand.u32 %s34, 1
        %s327 = scalar_lea.sflag [#allocation3], %s326
        %s328 = sand.u32 %s34, 1
        %s329 = smul.addr %s328, 4
        %s330 = scalar_lea.vmem [#allocation2], %s329
        %p331 = pneg %p47
        %p332 = pneg %p44
        %p333 = pneg %p68
        %p334 = pneg %p65
        %p335 = pneg %p89
        %p336 = pneg %p86
        %p337 = pneg %p110
        %p338 = pneg %p107
        %p339 = pneg %p131
        %p340 = pneg %p128
        %p341 = pneg %p152
        %p342 = pneg %p149
        %p343 = pneg %p173
        %p344 = pneg %p170
        %p345 = pneg %p199
        %p346 = pneg %p196
        %s347 = sand.u32 %s186, 1
        %s348 = scalar_lea.sflag [#allocation4], %s347
        %s349 = sand.u32 %s186, 1
        %s350 = smul.addr %s349, 8
        %s351 = scalar_lea.vmem [#allocation11], %s350
        %v353 = vld [vmem:[%s305] sm:$0xf]
        %v354 = vld [vmem:[#allocation5] sm:$0xf]
        %v355 = vld [vmem:[#allocation5 + $0x4] sm:$0xf]
        %v356 = vld [vmem:[#allocation5 + $0x8] sm:$0xf]
        %v357 = vld [vmem:[#allocation5 + $0xc] sm:$0xf]
        %v358 = vld [vmem:[#allocation5 + $0x10] sm:$0xf]
        %v359 = vld [vmem:[#allocation5 + $0x14] sm:$0xf]
        %v360 = vld [vmem:[#allocation5 + $0x18] sm:$0xf]
        %v361 = vld [vmem:[#allocation5 + $0x1c] sm:$0xf]
        %v362 = vld [vmem:[#allocation5 + $0x20] sm:$0xf]
        %v363 = vld [vmem:[#allocation5 + $0x24] sm:$0xf]
        %v364 = vld [vmem:[#allocation5 + $0x28] sm:$0xf]
        %v365 = vld [vmem:[#allocation5 + $0x2c] sm:$0xf]
        %v366 = vld [vmem:[#allocation5 + $0x30] sm:$0xf]
        %v367 = vld [vmem:[#allocation5 + $0x34] sm:$0xf]
        %v368 = vld [vmem:[#allocation5 + $0x38] sm:$0xf]
        %v369 = vld [vmem:[#allocation5 + $0x3c] sm:$0xf]
        %v370 = vld [vmem:[%s2] sm:$0x1]
        %v372 = vlaneseq
        %v373 = vshrl.u32 %v372, 7
        %v374 = vsub.s32 0, %v373
        %v375 = vrot.slane %v370, %v374
        %v393 = vunpack.c.l.b16 %v354
        %v394 = vunpack.c.l.b16 %v355
        %v395 = vunpack.c.l.b16 %v356
        %v396 = vunpack.c.l.b16 %v357
        %v397 = vunpack.c.l.b16 %v358
        %v398 = vunpack.c.l.b16 %v359
        %v399 = vunpack.c.l.b16 %v360
        %v400 = vunpack.c.l.b16 %v361
        %v401 = vunpack.c.l.b16 %v362
        %v402 = vunpack.c.l.b16 %v363
        %v403 = vunpack.c.l.b16 %v364
        %v404 = vunpack.c.l.b16 %v365
        %v405 = vunpack.c.l.b16 %v366
        %v406 = vunpack.c.l.b16 %v367
        %v407 = vunpack.c.l.b16 %v368
        %v408 = vunpack.c.l.b16 %v369
        %v409 = vpack.c.b16 %v394, %v393
        %v410 = vpack.c.b16 %v396, %v395
        %v411 = vpack.c.b16 %v398, %v397
        %v412 = vpack.c.b16 %v400, %v399
        %v413 = vpack.c.b16 %v402, %v401
        %v414 = vpack.c.b16 %v404, %v403
        %v415 = vpack.c.b16 %v406, %v405
        %v416 = vpack.c.b16 %v408, %v407
        %425 = vmatprep.subr.bf16.mxu0 0
        %426 = vmatpush1.bf16.msra.mxu0 %v409
        %427 = vmatprep.subr.bf16.mxu0 0
        %428 = vmatpush1.bf16.msra.mxu0 %v410
        %429 = vmatprep.subr.bf16.mxu0 0
        %430 = vmatpush1.bf16.msra.mxu0 %v411
        %431 = vmatprep.subr.bf16.mxu0 0
        %432 = vmatpush1.bf16.msra.mxu0 %v412
        %433 = vmatprep.subr.bf16.mxu0 0
        %434 = vmatpush1.bf16.msra.mxu0 %v413
        %435 = vmatprep.subr.bf16.mxu0 0
        %436 = vmatpush1.bf16.msra.mxu0 %v414
        %437 = vmatprep.subr.bf16.mxu0 0
        %438 = vmatpush1.bf16.msra.mxu0 %v415
        %439 = vmatprep.subr.bf16.mxu0 0
        %440 = vmatpush1.bf16.msra.mxu0 %v416
        %441 = vmatprep.subr.bf16.mxu0 0
        %442 = vmatpush1.bf16.msra.mxu0 0
        %443 = vmatprep.subr.bf16.mxu0 0
        %444 = vmatpush1.bf16.msra.mxu0 0
        %445 = vmatprep.subr.bf16.mxu0 0
        %446 = vmatpush1.bf16.msra.mxu0 0
        %447 = vmatprep.subr.bf16.mxu0 0
        %448 = vmatpush1.bf16.msra.mxu0 0
        %449 = vmatprep.subr.bf16.mxu0 0
        %450 = vmatpush1.bf16.msra.mxu0 0
        %451 = vmatprep.subr.bf16.mxu0 0
        %452 = vmatpush1.bf16.msra.mxu0 0
        %453 = vmatprep.subr.bf16.mxu0 0
        %454 = vmatpush1.bf16.msra.mxu0 0
        %455 = vmatprep.subr.bf16.mxu0 0
        %456 = vmatpush1.bf16.msra.mxu0 0
        %457 = vmatprep.mubr.bf16.mxu0 0
        %458 = vmatmul.mubr.bf16.gmra.mrb[0].mxu0 %v353
        %v459 = vpop.f32.mrb[0].mxu0
        %v460 = vadd.f32 %v375, %v459
        %v461 = vpop.f32.mrb[0].mxu0
        %v462 = vpop.f32.mrb[0].mxu0
        %v463 = vpop.f32.mrb[0].mxu0
        %464 = vdwg.mxu0
        %v465 = vmax.f32 %v460, 0.0
        %v466 = vpack.c.bf16 %v465, %v465
        %v467 = vld [vmem:[#allocation7] sm:$0xff]
        %v468 = vld [vmem:[#allocation7 + $0x8] sm:$0xff]
        %v469 = vld [vmem:[#allocation7 + $0x10] sm:$0xff]
        %v470 = vld [vmem:[#allocation7 + $0x18] sm:$0xff]
        %v471 = vld [vmem:[#allocation7 + $0x20] sm:$0xff]
        %v472 = vld [vmem:[#allocation7 + $0x28] sm:$0xff]
        %v473 = vld [vmem:[#allocation7 + $0x30] sm:$0xff]
        %v474 = vld [vmem:[#allocation7 + $0x38] sm:$0xff]
        %v475 = vld [vmem:[#allocation7 + $0x40] sm:$0xff]
        %v476 = vld [vmem:[#allocation7 + $0x48] sm:$0xff]
        %v477 = vld [vmem:[#allocation7 + $0x50] sm:$0xff]
        %v478 = vld [vmem:[#allocation7 + $0x58] sm:$0xff]
        %v479 = vld [vmem:[#allocation7 + $0x60] sm:$0xff]
        %v480 = vld [vmem:[#allocation7 + $0x68] sm:$0xff]
        %v481 = vld [vmem:[#allocation7 + $0x70] sm:$0xff]
        %v482 = vld [vmem:[#allocation7 + $0x78] sm:$0xff]
        %v499 = vunpack.c.l.b16 %v467
        %v500 = vunpack.c.h.b16 %v467
        %v501 = vunpack.c.l.b16 %v468
        %v502 = vunpack.c.h.b16 %v468
        %v503 = vunpack.c.l.b16 %v469
        %v504 = vunpack.c.h.b16 %v469
        %v505 = vunpack.c.l.b16 %v470
        %v506 = vunpack.c.h.b16 %v470
        %v507 = vunpack.c.l.b16 %v471
        %v508 = vunpack.c.h.b16 %v471
        %v509 = vunpack.c.l.b16 %v472
        %v510 = vunpack.c.h.b16 %v472
        %v511 = vunpack.c.l.b16 %v473
        %v512 = vunpack.c.h.b16 %v473
        %v513 = vunpack.c.l.b16 %v474
        %v514 = vunpack.c.h.b16 %v474
        %v515 = vunpack.c.l.b16 %v475
        %v516 = vunpack.c.h.b16 %v475
        %v517 = vunpack.c.l.b16 %v476
        %v518 = vunpack.c.h.b16 %v476
        %v519 = vunpack.c.l.b16 %v477
        %v520 = vunpack.c.h.b16 %v477
        %v521 = vunpack.c.l.b16 %v478
        %v522 = vunpack.c.h.b16 %v478
        %v523 = vunpack.c.l.b16 %v479
        %v524 = vunpack.c.h.b16 %v479
        %v525 = vunpack.c.l.b16 %v480
        %v526 = vunpack.c.h.b16 %v480
        %v527 = vunpack.c.l.b16 %v481
        %v528 = vunpack.c.h.b16 %v481
        %v529 = vunpack.c.l.b16 %v482
        %v530 = vunpack.c.h.b16 %v482
        %v531 = vpack.c.b16 %v501, %v499
        %v532 = vpack.c.b16 %v502, %v500
        %v533 = vpack.c.b16 %v505, %v503
        %v534 = vpack.c.b16 %v506, %v504
        %v535 = vpack.c.b16 %v509, %v507
        %v536 = vpack.c.b16 %v510, %v508
        %v537 = vpack.c.b16 %v513, %v511
        %v538 = vpack.c.b16 %v514, %v512
        %v539 = vpack.c.b16 %v517, %v515
        %v540 = vpack.c.b16 %v518, %v516
        %v541 = vpack.c.b16 %v521, %v519
        %v542 = vpack.c.b16 %v522, %v520
        %v543 = vpack.c.b16 %v525, %v523
        %v544 = vpack.c.b16 %v526, %v524
        %v545 = vpack.c.b16 %v529, %v527
        %v546 = vpack.c.b16 %v530, %v528
        %563 = vmatprep.subr.bf16.mxu0 %v532
        %564 = vmatpush1.bf16.msra.mxu0 %v531
        %565 = vmatprep.subr.bf16.mxu0 %v534
        %566 = vmatpush1.bf16.msra.mxu0 %v533
        %567 = vmatprep.subr.bf16.mxu0 %v536
        %568 = vmatpush1.bf16.msra.mxu0 %v535
        %569 = vmatprep.subr.bf16.mxu0 %v538
        %570 = vmatpush1.bf16.msra.mxu0 %v537
        %571 = vmatprep.subr.bf16.mxu0 %v540
        %572 = vmatpush1.bf16.msra.mxu0 %v539
        %573 = vmatprep.subr.bf16.mxu0 %v542
        %574 = vmatpush1.bf16.msra.mxu0 %v541
        %575 = vmatprep.subr.bf16.mxu0 %v544
        %576 = vmatpush1.bf16.msra.mxu0 %v543
        %577 = vmatprep.subr.bf16.mxu0 %v546
        %578 = vmatpush1.bf16.msra.mxu0 %v545
        %579 = vmatprep.subr.bf16.mxu0 0
        %580 = vmatpush1.bf16.msra.mxu0 0
        %581 = vmatprep.subr.bf16.mxu0 0
        %582 = vmatpush1.bf16.msra.mxu0 0
        %583 = vmatprep.subr.bf16.mxu0 0
        %584 = vmatpush1.bf16.msra.mxu0 0
        %585 = vmatprep.subr.bf16.mxu0 0
        %586 = vmatpush1.bf16.msra.mxu0 0
        %587 = vmatprep.subr.bf16.mxu0 0
        %588 = vmatpush1.bf16.msra.mxu0 0
        %589 = vmatprep.subr.bf16.mxu0 0
        %590 = vmatpush1.bf16.msra.mxu0 0
        %591 = vmatprep.subr.bf16.mxu0 0
        %592 = vmatpush1.bf16.msra.mxu0 0
        %593 = vmatprep.subr.bf16.mxu0 0
        %594 = vmatpush1.bf16.msra.mxu0 0
        %595 = vmatprep.mubr.bf16.mxu0 0
        %596 = vmatmul.mubr.bf16.gmra.mrb[0].mxu0 %v466
        %v597 = vpop.f32.mrb[0].mxu0
        %v598 = vadd.f32 0.0, %v597
        %v599 = vpop.f32.mrb[0].mxu0
        %v600 = vadd.f32 0.0, %v599
        %v601 = vpop.f32.mrb[0].mxu0
        %v602 = vpop.f32.mrb[0].mxu0
        %603 = vdwg.mxu0
        %v604 = vadd.f32 %v460, %v598
        %v605 = vmax.f32 %v604, 0.0
        %v606 = vpack.c.bf16 %v605, %v605
        %v607 = vld [vmem:[#allocation8] sm:$0xff]
        %v608 = vld [vmem:[#allocation8 + $0x8] sm:$0xff]
        %v609 = vld [vmem:[#allocation8 + $0x10] sm:$0xff]
        %v610 = vld [vmem:[#allocation8 + $0x18] sm:$0xff]
        %v611 = vld [vmem:[#allocation8 + $0x20] sm:$0xff]
        %v612 = vld [vmem:[#allocation8 + $0x28] sm:$0xff]
        %v613 = vld [vmem:[#allocation8 + $0x30] sm:$0xff]
        %v614 = vld [vmem:[#allocation8 + $0x38] sm:$0xff]
        %v615 = vld [vmem:[#allocation8 + $0x40] sm:$0xff]
        %v616 = vld [vmem:[#allocation8 + $0x48] sm:$0xff]
        %v617 = vld [vmem:[#allocation8 + $0x50] sm:$0xff]
        %v618 = vld [vmem:[#allocation8 + $0x58] sm:$0xff]
        %v619 = vld [vmem:[#allocation8 + $0x60] sm:$0xff]
        %v620 = vld [vmem:[#allocation8 + $0x68] sm:$0xff]
        %v621 = vld [vmem:[#allocation8 + $0x70] sm:$0xff]
        %v622 = vld [vmem:[#allocation8 + $0x78] sm:$0xff]
        %v639 = vunpack.c.l.b16 %v607
        %v640 = vunpack.c.h.b16 %v607
        %v641 = vunpack.c.l.b16 %v608
        %v642 = vunpack.c.h.b16 %v608
        %v643 = vunpack.c.l.b16 %v609
        %v644 = vunpack.c.h.b16 %v609
        %v645 = vunpack.c.l.b16 %v610
        %v646 = vunpack.c.h.b16 %v610
        %v647 = vunpack.c.l.b16 %v611
        %v648 = vunpack.c.h.b16 %v611
        %v649 = vunpack.c.l.b16 %v612
        %v650 = vunpack.c.h.b16 %v612
        %v651 = vunpack.c.l.b16 %v613
        %v652 = vunpack.c.h.b16 %v613
        %v653 = vunpack.c.l.b16 %v614
        %v654 = vunpack.c.h.b16 %v614
        %v655 = vunpack.c.l.b16 %v615
        %v656 = vunpack.c.h.b16 %v615
        %v657 = vunpack.c.l.b16 %v616
        %v658 = vunpack.c.h.b16 %v616
        %v659 = vunpack.c.l.b16 %v617
        %v660 = vunpack.c.h.b16 %v617
        %v661 = vunpack.c.l.b16 %v618
        %v662 = vunpack.c.h.b16 %v618
        %v663 = vunpack.c.l.b16 %v619
        %v664 = vunpack.c.h.b16 %v619
        %v665 = vunpack.c.l.b16 %v620
        %v666 = vunpack.c.h.b16 %v620
        %v667 = vunpack.c.l.b16 %v621
        %v668 = vunpack.c.h.b16 %v621
        %v669 = vunpack.c.l.b16 %v622
        %v670 = vunpack.c.h.b16 %v622
        %v671 = vpack.c.b16 %v641, %v639
        %v672 = vpack.c.b16 %v642, %v640
        %v673 = vpack.c.b16 %v645, %v643
        %v674 = vpack.c.b16 %v646, %v644
        %v675 = vpack.c.b16 %v649, %v647
        %v676 = vpack.c.b16 %v650, %v648
        %v677 = vpack.c.b16 %v653, %v651
        %v678 = vpack.c.b16 %v654, %v652
        %v679 = vpack.c.b16 %v657, %v655
        %v680 = vpack.c.b16 %v658, %v656
        %v681 = vpack.c.b16 %v661, %v659
        %v682 = vpack.c.b16 %v662, %v660
        %v683 = vpack.c.b16 %v665, %v663
        %v684 = vpack.c.b16 %v666, %v664
        %v685 = vpack.c.b16 %v669, %v667
        %v686 = vpack.c.b16 %v670, %v668
        %703 = vmatprep.subr.bf16.mxu0 %v672
        %704 = vmatpush1.bf16.msra.mxu0 %v671
        %705 = vmatprep.subr.bf16.mxu0 %v674
        %706 = vmatpush1.bf16.msra.mxu0 %v673
        %707 = vmatprep.subr.bf16.mxu0 %v676
        %708 = vmatpush1.bf16.msra.mxu0 %v675
        %709 = vmatprep.subr.bf16.mxu0 %v678
        %710 = vmatpush1.bf16.msra.mxu0 %v677
        %711 = vmatprep.subr.bf16.mxu0 %v680
        %712 = vmatpush1.bf16.msra.mxu0 %v679
        %713 = vmatprep.subr.bf16.mxu0 %v682
        %714 = vmatpush1.bf16.msra.mxu0 %v681
        %715 = vmatprep.subr.bf16.mxu0 %v684
        %716 = vmatpush1.bf16.msra.mxu0 %v683
        %717 = vmatprep.subr.bf16.mxu0 %v686
        %718 = vmatpush1.bf16.msra.mxu0 %v685
        %719 = vmatprep.subr.bf16.mxu0 0
        %720 = vmatpush1.bf16.msra.mxu0 0
        %721 = vmatprep.subr.bf16.mxu0 0
        %722 = vmatpush1.bf16.msra.mxu0 0
        %723 = vmatprep.subr.bf16.mxu0 0
        %724 = vmatpush1.bf16.msra.mxu0 0
        %725 = vmatprep.subr.bf16.mxu0 0
        %726 = vmatpush1.bf16.msra.mxu0 0
        %727 = vmatprep.subr.bf16.mxu0 0
        %728 = vmatpush1.bf16.msra.mxu0 0
        %729 = vmatprep.subr.bf16.mxu0 0
        %730 = vmatpush1.bf16.msra.mxu0 0
        %731 = vmatprep.subr.bf16.mxu0 0
        %732 = vmatpush1.bf16.msra.mxu0 0
        %733 = vmatprep.subr.bf16.mxu0 0
        %734 = vmatpush1.bf16.msra.mxu0 0
        %735 = vmatprep.mubr.bf16.mxu0 0
        %736 = vmatmul.mubr.bf16.gmra.mrb[0].mxu0 %v606
        %v737 = vpop.f32.mrb[0].mxu0
        %v738 = vadd.f32 0.0, %v737
        %v739 = vpop.f32.mrb[0].mxu0
        %v740 = vadd.f32 0.0, %v739
        %v741 = vpop.f32.mrb[0].mxu0
        %v742 = vpop.f32.mrb[0].mxu0
        %743 = vdwg.mxu0
        %v744 = vadd.f32 %v600, %v740
        %v745 = vadd.f32 %v460, %v738
        %v746 = vmax.f32 %v745, 0.0
        %v747 = vpack.c.bf16 %v746, %v746
        %v748 = vld [vmem:[#allocation10] sm:$0xf]
        %v749 = vld [vmem:[#allocation10 + $0x4] sm:$0xf]
        %v750 = vld [vmem:[#allocation10 + $0x8] sm:$0xf]
        %v751 = vld [vmem:[#allocation10 + $0xc] sm:$0xf]
        %v752 = vld [vmem:[#allocation10 + $0x10] sm:$0xf]
        %v753 = vld [vmem:[#allocation10 + $0x14] sm:$0xf]
        %v754 = vld [vmem:[#allocation10 + $0x18] sm:$0xf]
        %v755 = vld [vmem:[#allocation10 + $0x1c] sm:$0xf]
        %v756 = vld [vmem:[#allocation10 + $0x20] sm:$0xf]
        %v757 = vld [vmem:[#allocation10 + $0x24] sm:$0xf]
        %v758 = vld [vmem:[#allocation10 + $0x28] sm:$0xf]
        %v759 = vld [vmem:[#allocation10 + $0x2c] sm:$0xf]
        %v760 = vld [vmem:[#allocation10 + $0x30] sm:$0xf]
        %v761 = vld [vmem:[#allocation10 + $0x34] sm:$0xf]
        %v762 = vld [vmem:[#allocation10 + $0x38] sm:$0xf]
        %v763 = vld [vmem:[#allocation10 + $0x3c] sm:$0xf]
        %v780 = vunpack.c.l.b16 %v748
        %v781 = vunpack.c.l.b16 %v749
        %v782 = vunpack.c.l.b16 %v750
        %v783 = vunpack.c.l.b16 %v751
        %v784 = vunpack.c.l.b16 %v752
        %v785 = vunpack.c.l.b16 %v753
        %v786 = vunpack.c.l.b16 %v754
        %v787 = vunpack.c.l.b16 %v755
        %v788 = vunpack.c.l.b16 %v756
        %v789 = vunpack.c.l.b16 %v757
        %v790 = vunpack.c.l.b16 %v758
        %v791 = vunpack.c.l.b16 %v759
        %v792 = vunpack.c.l.b16 %v760
        %v793 = vunpack.c.l.b16 %v761
        %v794 = vunpack.c.l.b16 %v762
        %v795 = vunpack.c.l.b16 %v763
        %v796 = vpack.c.b16 %v781, %v780
        %v797 = vpack.c.b16 %v783, %v782
        %v798 = vpack.c.b16 %v785, %v784
        %v799 = vpack.c.b16 %v787, %v786
        %v800 = vpack.c.b16 %v789, %v788
        %v801 = vpack.c.b16 %v791, %v790
        %v802 = vpack.c.b16 %v793, %v792
        %v803 = vpack.c.b16 %v795, %v794
        %812 = vmatprep.subr.bf16.mxu0 0
        %813 = vmatpush1.bf16.msra.mxu0 %v796
        %814 = vmatprep.subr.bf16.mxu0 0
        %815 = vmatpush1.bf16.msra.mxu0 %v797
        %816 = vmatprep.subr.bf16.mxu0 0
        %817 = vmatpush1.bf16.msra.mxu0 %v798
        %818 = vmatprep.subr.bf16.mxu0 0
        %819 = vmatpush1.bf16.msra.mxu0 %v799
        %820 = vmatprep.subr.bf16.mxu0 0
        %821 = vmatpush1.bf16.msra.mxu0 %v800
        %822 = vmatprep.subr.bf16.mxu0 0
        %823 = vmatpush1.bf16.msra.mxu0 %v801
        %824 = vmatprep.subr.bf16.mxu0 0
        %825 = vmatpush1.bf16.msra.mxu0 %v802
        %826 = vmatprep.subr.bf16.mxu0 0
        %827 = vmatpush1.bf16.msra.mxu0 %v803
        %828 = vmatprep.subr.bf16.mxu0 0
        %829 = vmatpush1.bf16.msra.mxu0 0
        %830 = vmatprep.subr.bf16.mxu0 0
        %831 = vmatpush1.bf16.msra.mxu0 0
        %832 = vmatprep.subr.bf16.mxu0 0
        %833 = vmatpush1.bf16.msra.mxu0 0
        %834 = vmatprep.subr.bf16.mxu0 0
        %835 = vmatpush1.bf16.msra.mxu0 0
        %836 = vmatprep.subr.bf16.mxu0 0
        %837 = vmatpush1.bf16.msra.mxu0 0
        %838 = vmatprep.subr.bf16.mxu0 0
        %839 = vmatpush1.bf16.msra.mxu0 0
        %840 = vmatprep.subr.bf16.mxu0 0
        %841 = vmatpush1.bf16.msra.mxu0 0
        %842 = vmatprep.subr.bf16.mxu0 0
        %843 = vmatpush1.bf16.msra.mxu0 0
        %844 = vmatprep.mubr.bf16.mxu0 0
        %845 = vmatmul.mubr.bf16.gmra.mrb[0].mxu0 %v747
        %v846 = vpop.f32.mrb[0].mxu0
        %v847 = vadd.f32 0.0, %v846
        %v848 = vpop.f32.mrb[0].mxu0
        %v849 = vpop.f32.mrb[0].mxu0
        %v850 = vpop.f32.mrb[0].mxu0
        %851 = vdwg.mxu0
        %v852 = vadd.f32 %v744, %v847
        %v853 = vld [vmem:[%s6] sm:$0x1]
        %v855 = vlaneseq
        %v856 = vshrl.u32 %v855, 7
        %v857 = vsub.s32 0, %v856
        %v858 = vrot.slane %v853, %v857
        %v860 = vadd.f32 %v852, %v858
        %861 = vst [vmem:[%s351] sm:$0xff] %v860
        %s862 = sand.u32 %s186, 1
        %s863 = scalar_lea.sflag [#allocation4], %s862
        %s864 = sand.u32 %s186, 1
        %s865 = smul.addr %s864, 8
        %s866 = scalar_lea.vmem [#allocation11], %s865
        // Predicated region
        $region69: #{tpu_custom_call.1} parent=47 // pred_check
          %p867 = pneg %p196
        $region70: #{tpu_custom_call.1} parent=47 // pred_check_branch
          %869 = sbr.rel (%p867) target = $region72
        $region71: #{tpu_custom_call.1} parent=47 // pred_region
          %s871 = ssub.s32 128, 128
          %872 = vsyncadd %s863, %s871
          %s873 = smul.addr %s26, 128
          %s874 = scalar_lea.hbm %s7, %s873
          %s876 = sshll.u32 %s866, 4
          %s877 = int_to_ptr.vmem [resolvable:$true] %s876
          %879 = dma.vmem_to_hbm [thread:$0]  %s877, 128, %s874, %s863
        $region72: #{tpu_custom_call.1} parent=47 // pred_fallthru
          _
      $region48: #{tpu_custom_call.1} parent=5 // pred_fallthru
        _
      %p880 = scmp.le.s32.totalorder 2, %s21
      // Predicated region
      $region73: #{tpu_custom_call.1} parent=5 // pred_check
        %p881 = pneg %p880
      $region74: #{tpu_custom_call.1} parent=5 // pred_check_branch
        %883 = sbr.rel (%p881) target = $region76
      $region75: #{tpu_custom_call.1} parent=5 // pred_region
        %s884 = ssub.s32 %s21, 2
        // Predicated region
        $region77: #{tpu_custom_call.1} parent=75 // pred_check
          %p885 = pneg %p202
        $region78: #{tpu_custom_call.1} parent=75 // pred_check_branch
          %887 = sbr.rel (%p885) target = $region80
        $region79: #{tpu_custom_call.1} parent=75 // pred_region
          %s888 = sand.u32 %s187, 1
          %s889 = scalar_lea.sflag [#allocation4], %s888
          %s890 = sand.u32 %s187, 1
          %s891 = smul.addr %s890, 8
          %s892 = scalar_lea.vmem [#allocation11], %s891
          %893 = dma.done %s889, 128
        $region80: #{tpu_custom_call.1} parent=75 // pred_fallthru
          _
      $region76: #{tpu_custom_call.1} parent=5 // pred_fallthru
        _
    $region6: #{tpu_custom_call.1} parent=1 // loop_footer
      %s25 = sadd.s32 1, %s21
    $region7: #{tpu_custom_call.1} parent=1 // loop_footer_branch
      %20 = sbr.rel target = $region3
    $region8: #{tpu_custom_call.1} parent=1 // loop_exit
      _
    %894 = vsyncpa [#allocation3], 1
    %s895 = scalar_lea.sflag [#allocation3], 1
    %896 = vsyncpa %s895, 1
    %897 = vsyncpa [#allocation6], 1
    %898 = vsyncpa [#allocation9], 1
    %899 = vsyncpa [#allocation4], 1
    %s900 = scalar_lea.sflag [#allocation4], 1
    %901 = vsyncpa %s900, 1

</llo_original>
